<compile_context>
chip_gen: v7x
topology: tpu7x:2x2x1
jax: 0.10.0
libtpu: 0.0.40
codegen_flags: <defaults>
</compile_context>

<pallas_src>
import functools

import jax
import jax.numpy as jnp
from jax import lax
from jax.experimental import pallas as pl
from jax.experimental.pallas import tpu as pltpu

LEAK = 0.01       # nn.LeakyReLU default negative_slope
BN_EPS = 1e-5     # nn.BatchNorm2d default eps


def _lrelu(v):
    return jnp.where(v >= 0, v, LEAK * v)


# ----------------------------------------------------------------------------
# Pallas kernel: one batch element per grid step, everything fused in VMEM.
# Activations live as (C, H*W): sublanes = channels, lanes = flattened spatial.
# ----------------------------------------------------------------------------
def up_inception_resnet_kernel(
    x_ref,                        # (1, C, HW) f32
    m_ref,                        # (4, HW) f32 masks: [w!=0, w!=W-1, h!=0, h!=H-1]
    wh_ref, bh_ref,               # fused head (branch_0 + branch_1[0] 1x1): (2C, Cin), (2C, 1)
    w1b_ref, b1b_ref,             # branch_1[1] (1,3): fused taps (C, 3C), (C, 1)
    w1c_ref, b1c_ref,             # branch_1[2] (3,1): fused taps (C, 3C), (C, 1)
    wc_ref, bc_ref,               # final 1x1 over concat: (C, 2C), (C, 1)
    o_ref,                        # (1, C, HW) f32
    *, scale, img_w, mm_dtype,
):
    x = x_ref[0]                  # (C, HW) f32
    C, HW = x.shape

    def mm(w_ref_, a_f32):
        # (Co, K) @ (K, HW) on the MXU; lane (minor) dim = HW, multiple of 128.
        return jnp.dot(w_ref_[...], a_f32.astype(mm_dtype),
                       preferred_element_type=jnp.float32)

    # ----- fused head: branch_0 1x1 and branch_1[0] 1x1 in ONE matmul -----
    head = _lrelu(mm(wh_ref, x) + bh_ref[...])           # (2C, HW)
    y0 = head[0:C]                                       # branch_0 output
    y1 = head[C:2 * C]                                   # branch_1 stage-a output

    # ----- branch 1, stage b: (1,3) conv, padding (0,1) along W -----
    # shifted copies via lane-roll (XLU) + edge mask; 3 taps fused, K = 3C.
    m_w0 = m_ref[0:1, :]                                 # 0 where w == 0
    m_wL = m_ref[1:2, :]                                 # 0 where w == W-1
    s_m1 = pltpu.roll(y1, 1, axis=1) * m_w0              # y1 at (h, w-1)
    s_p1 = pltpu.roll(y1, HW - 1, axis=1) * m_wL         # y1 at (h, w+1)
    stacked = jnp.concatenate([s_m1, y1, s_p1], axis=0)  # (3C, HW)
    y1 = _lrelu(mm(w1b_ref, stacked) + b1b_ref[...])

    # ----- branch 1, stage c: (3,1) conv, padding (1,0) along H -----
    m_h0 = m_ref[2:3, :]                                 # 0 where h == 0
    m_hL = m_ref[3:4, :]                                 # 0 where h == H-1
    s_m1 = pltpu.roll(y1, img_w, axis=1) * m_h0          # y1 at (h-1, w)
    s_p1 = pltpu.roll(y1, HW - img_w, axis=1) * m_hL     # y1 at (h+1, w)
    stacked = jnp.concatenate([s_m1, y1, s_p1], axis=0)  # (3C, HW)
    y1 = _lrelu(mm(w1c_ref, stacked) + b1c_ref[...])

    # ----- concat(channels) + final 1x1 conv (with bias), one matmul -----
    cat = jnp.concatenate([y0, y1], axis=0)              # (2C, HW)
    z = mm(wc_ref, cat) + bc_ref[...]

    # ----- residual + LeakyReLU (f32) -----
    o_ref[0] = _lrelu(z * scale + x)


# ----------------------------------------------------------------------------
# Wrapper: BN folding, weight transposition/tap fusion, masks, pallas_call.
# ----------------------------------------------------------------------------
def up_inception_resnet(x, raw_params, scale=0.2, mm_dtype=jnp.bfloat16):
    """x: (N, C, H, W) float32, NCHW (PyTorch-native) layout."""
    N, C, H, W = x.shape
    HW = H * W
    assert HW % 128 == 0, "H*W must be a multiple of 128 for the lane-dense layout"
    assert C % 8 == 0, "C should be a multiple of 8 for cheap sublane slicing/concat"
    assert raw_params["w0"].shape[-2] == C, "conv in_size must match input channels"
    assert raw_params["w0"].shape[-1] == C, "residual requires in_size == outn"

    (wh, bh, w1b, b1b, w1c, b1c, wc, bc) = fold_params(raw_params, mm_dtype)

    # Precomputed per-pixel edge masks for the (1,3)/(3,1) shifted taps.
    hw_idx = jnp.arange(HW, dtype=jnp.int32)
    w_idx, h_idx = hw_idx % W, hw_idx // W
    masks = jnp.stack([
        w_idx != 0, w_idx != (W - 1), h_idx != 0, h_idx != (H - 1),
    ]).astype(jnp.float32)                               # (4, HW)

    x_r = x.reshape(N, C, HW)                            # free: NCHW is already C-major

    def _const(shape):
        return pl.BlockSpec(shape, lambda n, _k=len(shape): (0,) * _k)

    grid_spec = pltpu.PrefetchScalarGridSpec(
        num_scalar_prefetch=0,
        grid=(N,),
        in_specs=[
            pl.BlockSpec((1, C, HW), lambda n: (n, 0, 0)),
            _const(masks.shape),
            _const(wh.shape), _const(bh.shape),
            _const(w1b.shape), _const(b1b.shape),
            _const(w1c.shape), _const(b1c.shape),
            _const(wc.shape), _const(bc.shape),
        ],
        out_specs=pl.BlockSpec((1, C, HW), lambda n: (n, 0, 0)),
    )

    out = pl.pallas_call(
        functools.partial(up_inception_resnet_kernel,
                          scale=scale, img_w=W, mm_dtype=mm_dtype),
        out_shape=jax.ShapeDtypeStruct((N, C, HW), jnp.float32),
        grid_spec=grid_spec,
        compiler_params=pltpu.CompilerParams(
            dimension_semantics=("parallel",)),     # megacore-shard over batch
    )(x_r, masks, wh, bh, w1b, b1b, w1c, b1c, wc, bc)
    return out.reshape(N, C, H, W)


# ----------------------------------------------------------------------------
# Deterministic synthetic parameters (BasicConv2 = conv(no bias) + BN), HWIO.
# ----------------------------------------------------------------------------
def init_params(key, cin, cout):
    ks = jax.random.split(key, 10)

    def conv_w(k, kh, kw, i, o):            # HWIO
        return 0.1 * jax.random.normal(k, (kh, kw, i, o), jnp.float32)

    def bn_p(k, c):
        k1, k2, k3, k4 = jax.random.split(k, 4)
        gamma = 1.0 + 0.1 * jax.random.normal(k1, (c,), jnp.float32)
        beta = 0.1 * jax.random.normal(k2, (c,), jnp.float32)
        mean = 0.1 * jax.random.normal(k3, (c,), jnp.float32)
        var = 0.5 + 0.1 * jax.random.uniform(k4, (c,), jnp.float32)
        return gamma, beta, mean, var

    return {
        "w0": conv_w(ks[0], 1, 1, cin, cout),  "bn0": bn_p(ks[1], cout),
        "w1a": conv_w(ks[2], 1, 1, cin, cout), "bn1a": bn_p(ks[3], cout),
        "w1b": conv_w(ks[4], 1, 3, cout, cout), "bn1b": bn_p(ks[5], cout),
        "w1c": conv_w(ks[6], 3, 1, cout, cout), "bn1c": bn_p(ks[7], cout),
        "wc": conv_w(ks[8], 1, 1, 2 * cout, cout),
        "bc": 0.1 * jax.random.normal(ks[9], (cout,), jnp.float32),
    }


def fold_params(p, mm_dtype):
    """Fold eval-mode BN into the bias-free convs; transpose to (Cout, K);
    fuse the two branch-head 1x1 convs into one (2C, Cin) weight and the
    (1,3)/(3,1) taps into single (Cout, 3*Cin) weights."""
    def fold(w_hwio, bn):
        gamma, beta, mean, var = bn
        s = gamma / jnp.sqrt(var + BN_EPS)          # per-output-channel scale
        return w_hwio * s, (beta - mean * s)

    w0f, b0 = fold(p["w0"], p["bn0"])               # (1,1,Ci,C)
    w1af, b1a = fold(p["w1a"], p["bn1a"])
    w1bf, b1b = fold(p["w1b"], p["bn1b"])           # (1,3,C,C), taps over kw
    w1cf, b1c = fold(p["w1c"], p["bn1c"])           # (3,1,C,C), taps over kh

    # fused head: rows [0:C] = branch_0 1x1, rows [C:2C] = branch_1[0] 1x1
    wh_t = jnp.concatenate([w0f[0, 0].T, w1af[0, 0].T], axis=0)        # (2C, Cin)
    bh = jnp.concatenate([b0, b1a], axis=0)                            # (2C,)
    # fused tap weights: columns [0:C]=tap(-1), [C:2C]=tap(0), [2C:3C]=tap(+1)
    w1b_t = jnp.concatenate([w1bf[0, k].T for k in range(3)], axis=1)  # (C, 3C)
    w1c_t = jnp.concatenate([w1cf[k, 0].T for k in range(3)], axis=1)  # (C, 3C)
    wcat_t = p["wc"][0, 0].T                                           # (C, 2C)

    cast = lambda w: w.astype(mm_dtype)             # MXU operands in bf16
    col = lambda b: b.reshape(-1, 1).astype(jnp.float32)   # lane-broadcast bias
    return (cast(wh_t), col(bh), cast(w1b_t), col(b1b),
            cast(w1c_t), col(b1c), cast(wcat_t), col(p["bc"]))


# ----------------------------------------------------------------------------
# Pure-JAX reference (matches the PyTorch forward, NCHW, f32 everywhere)
# ----------------------------------------------------------------------------
def reference(x, p, scale=0.2):
    def conv(x, w, padding):
        return lax.conv_general_dilated(
            x, w, window_strides=(1, 1), padding=padding,
            dimension_numbers=("NCHW", "HWIO", "NCHW"))

    def basic(x, w, bn, padding):
        gamma, beta, mean, var = (t.reshape(1, -1, 1, 1) for t in bn)
        y = conv(x, w, padding)
        y = (y - mean) / jnp.sqrt(var + BN_EPS) * gamma + beta
        return _lrelu(y)

    x0 = basic(x, p["w0"], p["bn0"], [(0, 0), (0, 0)])
    x1 = basic(x, p["w1a"], p["bn1a"], [(0, 0), (0, 0)])
    x1 = basic(x1, p["w1b"], p["bn1b"], [(0, 0), (1, 1)])
    x1 = basic(x1, p["w1c"], p["bn1c"], [(1, 1), (0, 0)])
    cat = jnp.concatenate([x0, x1], axis=1)
    out = conv(cat, p["wc"], [(0, 0), (0, 0)]) + p["bc"].reshape(1, -1, 1, 1)
    return _lrelu(out * scale + x)


if __name__ == "__main__":
    N, C, H, W = 2, 8, 16, 16        # in_size == outn (required by residual)
    scale = 0.2

    key = jax.random.PRNGKey(0)
    kx, kp = jax.random.split(key)
    x = jax.random.normal(kx, (N, C, H, W), jnp.float32)   # NCHW, PyTorch layout
    params = init_params(kp, C, C)

    out = jax.block_until_ready(up_inception_resnet(x, params, scale=scale))
    ref = jax.block_until_ready(reference(x, params, scale=scale))

    assert out.shape == ref.shape == (N, C, H, W)
    err = float(jnp.max(jnp.abs(out - ref)))
    # bf16 MXU operands with f32 accumulation -> slightly looser tolerance.
    assert jnp.allclose(out, ref, atol=2e-2, rtol=2e-2), err

    print("KERNEL_OK")
</pallas_src>

<mosaic_0001>
module attributes {stable_mosaic.version = 11 : i64} {
  func.func @up_inception_resnet_kernel(%arg0: i32, %arg1: memref<1x8x256xf32, #tpu.memory_space<vmem>>, %arg2: memref<4x256xf32, #tpu.memory_space<vmem>>, %arg3: memref<16x8xbf16, #tpu.memory_space<vmem>>, %arg4: memref<16x1xf32, #tpu.memory_space<vmem>>, %arg5: memref<8x24xbf16, #tpu.memory_space<vmem>>, %arg6: memref<8x1xf32, #tpu.memory_space<vmem>>, %arg7: memref<8x24xbf16, #tpu.memory_space<vmem>>, %arg8: memref<8x1xf32, #tpu.memory_space<vmem>>, %arg9: memref<8x16xbf16, #tpu.memory_space<vmem>>, %arg10: memref<8x1xf32, #tpu.memory_space<vmem>>, %arg11: memref<1x8x256xf32, #tpu.memory_space<vmem>>) attributes {dimension_semantics = [#tpu.dimension_semantics<parallel>], iteration_bounds = array<i64: 2>, scalar_prefetch = 0 : i64, scratch_operands = 0 : i64, tpu.core_type = #tpu.core_type<tc>, window_params = [{transform_indices = @transform_0, window_bounds = array<i64: 1, 8, 256>}, {pipeline_mode = #tpu.pipeline_mode<synchronous>, transform_indices = @transform_1, window_bounds = array<i64: 4, 256>}, {pipeline_mode = #tpu.pipeline_mode<synchronous>, transform_indices = @transform_2, window_bounds = array<i64: 16, 8>}, {pipeline_mode = #tpu.pipeline_mode<synchronous>, transform_indices = @transform_3, window_bounds = array<i64: 16, 1>}, {pipeline_mode = #tpu.pipeline_mode<synchronous>, transform_indices = @transform_4, window_bounds = array<i64: 8, 24>}, {pipeline_mode = #tpu.pipeline_mode<synchronous>, transform_indices = @transform_5, window_bounds = array<i64: 8, 1>}, {pipeline_mode = #tpu.pipeline_mode<synchronous>, transform_indices = @transform_6, window_bounds = array<i64: 8, 24>}, {pipeline_mode = #tpu.pipeline_mode<synchronous>, transform_indices = @transform_7, window_bounds = array<i64: 8, 1>}, {pipeline_mode = #tpu.pipeline_mode<synchronous>, transform_indices = @transform_8, window_bounds = array<i64: 8, 16>}, {pipeline_mode = #tpu.pipeline_mode<synchronous>, transform_indices = @transform_9, window_bounds = array<i64: 8, 1>}, {transform_indices = @transform_10, window_bounds = array<i64: 1, 8, 256>}]} {
    %c0 = arith.constant 0 : index
    %c0_0 = arith.constant 0 : index
    %c0_1 = arith.constant 0 : index
    %0 = vector.load %arg1[%c0, %c0_0, %c0_1] : memref<1x8x256xf32, #tpu.memory_space<vmem>>, vector<1x8x256xf32>
    %1 = vector.shape_cast %0 : vector<1x8x256xf32> to vector<8x256xf32>
    %c0_2 = arith.constant 0 : index
    %c0_3 = arith.constant 0 : index
    %2 = vector.load %arg3[%c0_2, %c0_3] : memref<16x8xbf16, #tpu.memory_space<vmem>>, vector<16x8xbf16>
    %3 = arith.truncf %1 : vector<8x256xf32> to vector<8x256xbf16>
    %cst = arith.constant dense<0.000000e+00> : vector<16x256xf32>
    %4 = tpu.matmul %2, %3, %cst {dimension_numbers = #tpu.dot_dimension_numbers<[1], [0], [0], [1], [0, 0, 1, 1], [], []>} : vector<16x8xbf16>, vector<8x256xbf16>, vector<16x256xf32> -> vector<16x256xf32>
    %c0_4 = arith.constant 0 : index
    %c0_5 = arith.constant 0 : index
    %5 = vector.load %arg4[%c0_4, %c0_5] : memref<16x1xf32, #tpu.memory_space<vmem>>, vector<16x1xf32>
    %6 = vector.broadcast %5 : vector<16x1xf32> to vector<16x256xf32>
    %7 = arith.addf %4, %6 : vector<16x256xf32>
    %cst_6 = arith.constant 0.000000e+00 : f32
    %8 = vector.broadcast %cst_6 : f32 to vector<16x256xf32>
    %9 = arith.cmpf oge, %7, %8 : vector<16x256xf32>
    %cst_7 = arith.constant 0.00999999977 : f32
    %10 = vector.broadcast %cst_7 : f32 to vector<16x256xf32>
    %11 = arith.mulf %10, %7 : vector<16x256xf32>
    %12 = arith.select %9, %7, %11 : vector<16x256xi1>, vector<16x256xf32>
    %13 = vector.extract_strided_slice %12 {offsets = [0, 0], sizes = [8, 256], strides = [1, 1]} : vector<16x256xf32> to vector<8x256xf32>
    %14 = vector.extract_strided_slice %12 {offsets = [8, 0], sizes = [8, 256], strides = [1, 1]} : vector<16x256xf32> to vector<8x256xf32>
    %c0_8 = arith.constant 0 : index
    %c0_9 = arith.constant 0 : index
    %15 = vector.load %arg2[%c0_8, %c0_9] : memref<4x256xf32, #tpu.memory_space<vmem>>, vector<1x256xf32>
    %c1 = arith.constant 1 : index
    %c0_10 = arith.constant 0 : index
    %16 = vector.load %arg2[%c1, %c0_10] : memref<4x256xf32, #tpu.memory_space<vmem>>, vector<1x256xf32>
    %c1_i32 = arith.constant 1 : i32
    %17 = tpu.dynamic_rotate %14 by %c1_i32 dim 1 : vector<8x256xf32>, i32 -> vector<8x256xf32>
    %18 = vector.broadcast %15 : vector<1x256xf32> to vector<8x256xf32>
    %19 = arith.mulf %17, %18 : vector<8x256xf32>
    %c255_i32 = arith.constant 255 : i32
    %20 = tpu.dynamic_rotate %14 by %c255_i32 dim 1 : vector<8x256xf32>, i32 -> vector<8x256xf32>
    %21 = vector.broadcast %16 : vector<1x256xf32> to vector<8x256xf32>
    %22 = arith.mulf %20, %21 : vector<8x256xf32>
    %23 = tpu.concatenate %19, %14, %22 in 0 : vector<8x256xf32>, vector<8x256xf32>, vector<8x256xf32> -> vector<24x256xf32>
    %c0_11 = arith.constant 0 : index
    %c0_12 = arith.constant 0 : index
    %24 = vector.load %arg5[%c0_11, %c0_12] : memref<8x24xbf16, #tpu.memory_space<vmem>>, vector<8x24xbf16>
    %25 = arith.truncf %23 : vector<24x256xf32> to vector<24x256xbf16>
    %cst_13 = arith.constant dense<0.000000e+00> : vector<8x256xf32>
    %26 = tpu.matmul %24, %25, %cst_13 {dimension_numbers = #tpu.dot_dimension_numbers<[1], [0], [0], [1], [0, 0, 1, 1], [], []>} : vector<8x24xbf16>, vector<24x256xbf16>, vector<8x256xf32> -> vector<8x256xf32>
    %c0_14 = arith.constant 0 : index
    %c0_15 = arith.constant 0 : index
    %27 = vector.load %arg6[%c0_14, %c0_15] : memref<8x1xf32, #tpu.memory_space<vmem>>, vector<8x1xf32>
    %28 = vector.broadcast %27 : vector<8x1xf32> to vector<8x256xf32>
    %29 = arith.addf %26, %28 : vector<8x256xf32>
    %cst_16 = arith.constant 0.000000e+00 : f32
    %30 = vector.broadcast %cst_16 : f32 to vector<8x256xf32>
    %31 = arith.cmpf oge, %29, %30 : vector<8x256xf32>
    %cst_17 = arith.constant 0.00999999977 : f32
    %32 = vector.broadcast %cst_17 : f32 to vector<8x256xf32>
    %33 = arith.mulf %32, %29 : vector<8x256xf32>
    %34 = arith.select %31, %29, %33 : vector<8x256xi1>, vector<8x256xf32>
    %c2 = arith.constant 2 : index
    %c0_18 = arith.constant 0 : index
    %35 = vector.load %arg2[%c2, %c0_18] : memref<4x256xf32, #tpu.memory_space<vmem>>, vector<1x256xf32>
    %c3 = arith.constant 3 : index
    %c0_19 = arith.constant 0 : index
    %36 = vector.load %arg2[%c3, %c0_19] : memref<4x256xf32, #tpu.memory_space<vmem>>, vector<1x256xf32>
    %c16_i32 = arith.constant 16 : i32
    %37 = tpu.dynamic_rotate %34 by %c16_i32 dim 1 : vector<8x256xf32>, i32 -> vector<8x256xf32>
    %38 = vector.broadcast %35 : vector<1x256xf32> to vector<8x256xf32>
    %39 = arith.mulf %37, %38 : vector<8x256xf32>
    %c240_i32 = arith.constant 240 : i32
    %40 = tpu.dynamic_rotate %34 by %c240_i32 dim 1 : vector<8x256xf32>, i32 -> vector<8x256xf32>
    %41 = vector.broadcast %36 : vector<1x256xf32> to vector<8x256xf32>
    %42 = arith.mulf %40, %41 : vector<8x256xf32>
    %43 = tpu.concatenate %39, %34, %42 in 0 : vector<8x256xf32>, vector<8x256xf32>, vector<8x256xf32> -> vector<24x256xf32>
    %c0_20 = arith.constant 0 : index
    %c0_21 = arith.constant 0 : index
    %44 = vector.load %arg7[%c0_20, %c0_21] : memref<8x24xbf16, #tpu.memory_space<vmem>>, vector<8x24xbf16>
    %45 = arith.truncf %43 : vector<24x256xf32> to vector<24x256xbf16>
    %cst_22 = arith.constant dense<0.000000e+00> : vector<8x256xf32>
    %46 = tpu.matmul %44, %45, %cst_22 {dimension_numbers = #tpu.dot_dimension_numbers<[1], [0], [0], [1], [0, 0, 1, 1], [], []>} : vector<8x24xbf16>, vector<24x256xbf16>, vector<8x256xf32> -> vector<8x256xf32>
    %c0_23 = arith.constant 0 : index
    %c0_24 = arith.constant 0 : index
    %47 = vector.load %arg8[%c0_23, %c0_24] : memref<8x1xf32, #tpu.memory_space<vmem>>, vector<8x1xf32>
    %48 = vector.broadcast %47 : vector<8x1xf32> to vector<8x256xf32>
    %49 = arith.addf %46, %48 : vector<8x256xf32>
    %cst_25 = arith.constant 0.000000e+00 : f32
    %50 = vector.broadcast %cst_25 : f32 to vector<8x256xf32>
    %51 = arith.cmpf oge, %49, %50 : vector<8x256xf32>
    %cst_26 = arith.constant 0.00999999977 : f32
    %52 = vector.broadcast %cst_26 : f32 to vector<8x256xf32>
    %53 = arith.mulf %52, %49 : vector<8x256xf32>
    %54 = arith.select %51, %49, %53 : vector<8x256xi1>, vector<8x256xf32>
    %55 = tpu.concatenate %13, %54 in 0 : vector<8x256xf32>, vector<8x256xf32> -> vector<16x256xf32>
    %c0_27 = arith.constant 0 : index
    %c0_28 = arith.constant 0 : index
    %56 = vector.load %arg9[%c0_27, %c0_28] : memref<8x16xbf16, #tpu.memory_space<vmem>>, vector<8x16xbf16>
    %57 = arith.truncf %55 : vector<16x256xf32> to vector<16x256xbf16>
    %cst_29 = arith.constant dense<0.000000e+00> : vector<8x256xf32>
    %58 = tpu.matmul %56, %57, %cst_29 {dimension_numbers = #tpu.dot_dimension_numbers<[1], [0], [0], [1], [0, 0, 1, 1], [], []>} : vector<8x16xbf16>, vector<16x256xbf16>, vector<8x256xf32> -> vector<8x256xf32>
    %c0_30 = arith.constant 0 : index
    %c0_31 = arith.constant 0 : index
    %59 = vector.load %arg10[%c0_30, %c0_31] : memref<8x1xf32, #tpu.memory_space<vmem>>, vector<8x1xf32>
    %60 = vector.broadcast %59 : vector<8x1xf32> to vector<8x256xf32>
    %61 = arith.addf %58, %60 : vector<8x256xf32>
    %cst_32 = arith.constant 2.000000e-01 : f32
    %62 = vector.broadcast %cst_32 : f32 to vector<8x256xf32>
    %63 = arith.mulf %61, %62 : vector<8x256xf32>
    %64 = arith.addf %63, %1 : vector<8x256xf32>
    %cst_33 = arith.constant 0.000000e+00 : f32
    %65 = vector.broadcast %cst_33 : f32 to vector<8x256xf32>
    %66 = arith.cmpf oge, %64, %65 : vector<8x256xf32>
    %cst_34 = arith.constant 0.00999999977 : f32
    %67 = vector.broadcast %cst_34 : f32 to vector<8x256xf32>
    %68 = arith.mulf %67, %64 : vector<8x256xf32>
    %69 = arith.select %66, %64, %68 : vector<8x256xi1>, vector<8x256xf32>
    %c0_35 = arith.constant 0 : index
    %c0_36 = arith.constant 0 : index
    %c0_37 = arith.constant 0 : index
    %70 = vector.load %arg11[%c0_35, %c0_36, %c0_37] : memref<1x8x256xf32, #tpu.memory_space<vmem>>, vector<1x8x256xf32>
    %71 = vector.shape_cast %70 : vector<1x8x256xf32> to vector<8x256xf32>
    %72 = vector.shape_cast %69 : vector<8x256xf32> to vector<1x8x256xf32>
    tpu.vector_store %arg11[%c0_35, %c0_36, %c0_37], %72 {strides = array<i32>} : memref<1x8x256xf32, #tpu.memory_space<vmem>>, vector<1x8x256xf32>,
    return
  }
  func.func @transform_0(%arg0: i32) -> (i32, i32, i32) {
    %c0_i32 = arith.constant 0 : i32
    %c0_i32_0 = arith.constant 0 : i32
    %c0_i32_1 = arith.constant 0 : i32
    return %arg0, %c0_i32, %c0_i32_0 : i32, i32, i32
  }
  func.func @transform_1(%arg0: i32) -> (i32, i32) {
    %c0_i32 = arith.constant 0 : i32
    %c0_i32_0 = arith.constant 0 : i32
    %c0_i32_1 = arith.constant 0 : i32
    return %c0_i32, %c0_i32_0 : i32, i32
  }
  func.func @transform_2(%arg0: i32) -> (i32, i32) {
    %c0_i32 = arith.constant 0 : i32
    %c0_i32_0 = arith.constant 0 : i32
    %c0_i32_1 = arith.constant 0 : i32
    return %c0_i32, %c0_i32_0 : i32, i32
  }
  func.func @transform_3(%arg0: i32) -> (i32, i32) {
    %c0_i32 = arith.constant 0 : i32
    %c0_i32_0 = arith.constant 0 : i32
    %c0_i32_1 = arith.constant 0 : i32
    return %c0_i32, %c0_i32_0 : i32, i32
  }
  func.func @transform_4(%arg0: i32) -> (i32, i32) {
    %c0_i32 = arith.constant 0 : i32
    %c0_i32_0 = arith.constant 0 : i32
    %c0_i32_1 = arith.constant 0 : i32
    return %c0_i32, %c0_i32_0 : i32, i32
  }
  func.func @transform_5(%arg0: i32) -> (i32, i32) {
    %c0_i32 = arith.constant 0 : i32
    %c0_i32_0 = arith.constant 0 : i32
    %c0_i32_1 = arith.constant 0 : i32
    return %c0_i32, %c0_i32_0 : i32, i32
  }
  func.func @transform_6(%arg0: i32) -> (i32, i32) {
    %c0_i32 = arith.constant 0 : i32
    %c0_i32_0 = arith.constant 0 : i32
    %c0_i32_1 = arith.constant 0 : i32
    return %c0_i32, %c0_i32_0 : i32, i32
  }
  func.func @transform_7(%arg0: i32) -> (i32, i32) {
    %c0_i32 = arith.constant 0 : i32
    %c0_i32_0 = arith.constant 0 : i32
    %c0_i32_1 = arith.constant 0 : i32
    return %c0_i32, %c0_i32_0 : i32, i32
  }
  func.func @transform_8(%arg0: i32) -> (i32, i32) {
    %c0_i32 = arith.constant 0 : i32
    %c0_i32_0 = arith.constant 0 : i32
    %c0_i32_1 = arith.constant 0 : i32
    return %c0_i32, %c0_i32_0 : i32, i32
  }
  func.func @transform_9(%arg0: i32) -> (i32, i32) {
    %c0_i32 = arith.constant 0 : i32
    %c0_i32_0 = arith.constant 0 : i32
    %c0_i32_1 = arith.constant 0 : i32
    return %c0_i32, %c0_i32_0 : i32, i32
  }
  func.func @transform_10(%arg0: i32) -> (i32, i32, i32) {
    %c0_i32 = arith.constant 0 : i32
    %c0_i32_0 = arith.constant 0 : i32
    %c0_i32_1 = arith.constant 0 : i32
    return %arg0, %c0_i32, %c0_i32_0 : i32, i32, i32
  }
}

</mosaic_0001>

<llo_original>
// kernel: tpu_custom_call.1
$region0: #{tpu_custom_call.1}
  #allocation0 [shape = 'u32[]', space=smem, size = 0x4, offset = 0x4, fixed_abs, tag = 'smem constant byte address 0x4 - core index']
  #allocation1 [shape = 'u32[144,128]{1,0:T(1,128)}', space=vmem, size = 0x12000, scoped, tag = 'internal scratch']
  %s0 = inlined_call_operand.vmem [shape: f32[2,8,256], index: 0, kind: input, shape index: {}]
  %s1 = inlined_call_operand.vmem [shape: f32[4,256], index: 1, kind: input, shape index: {}]
  %s2 = inlined_call_operand.vmem [shape: bf16[16,8], index: 2, kind: input, shape index: {}]
  %s3 = inlined_call_operand.vmem [shape: f32[16,1], index: 3, kind: input, shape index: {}]
  %s4 = inlined_call_operand.vmem [shape: bf16[8,24], index: 4, kind: input, shape index: {}]
  %s5 = inlined_call_operand.vmem [shape: f32[8,1], index: 5, kind: input, shape index: {}]
  %s6 = inlined_call_operand.vmem [shape: bf16[8,24], index: 6, kind: input, shape index: {}]
  %s7 = inlined_call_operand.vmem [shape: f32[8,1], index: 7, kind: input, shape index: {}]
  %s8 = inlined_call_operand.vmem [shape: bf16[8,16], index: 8, kind: input, shape index: {}]
  %s9 = inlined_call_operand.vmem [shape: f32[8,1], index: 9, kind: input, shape index: {}]
  %s10 = inlined_call_operand.hbm [shape: f32[2,8,256], index: 10, kind: output, shape index: {}]
  %s11 = sld [smem:[#allocation0]]
  $region73: #{tpu_custom_call.1} parent=0
    _
  %s13 = ssub.s32 1, %s11
  %s14 = scalar_select 0, %s13, %s11
  $region1: #{tpu_custom_call.1} parent=0
    #allocation2 [shape = 'u8[16384]{0}', space=vmem, size = 0x4000, scoped, tag = 'output window, operand 0']
    #allocation3 [shape = 's32[2]{0}', space=sflag, size = 0x8, scoped, tag = 'scoped memory for tpu_custom_call.1']
    %15 = vsyncpa [#allocation3], 0
    %s16 = scalar_lea.sflag [#allocation3], 1
    %17 = vsyncpa %s16, 0
    loop: start=0, step=1, limit=4
    $region2: #{tpu_custom_call.1} parent=1 // loop_pre_header
      _
    $region3: #{tpu_custom_call.1} parent=1 // loop_header
      %s19 = sphi 0, %s23
      %p20 = scmp.ge.s32.totalorder %s19, 4
      %s29 = sphi 0, %s31
      %s32 = sphi 0, %s29
      %s33 = sphi 0, %s32
      %s49 = sphi 0, %s33
      %s53 = sphi 0, %s53
      %s55 = sphi 0, %s53
      %s56 = sphi 0, %s55
      %s70 = sphi 0, %s56
      %s74 = sphi 0, %s74
      %s76 = sphi 0, %s74
      %s77 = sphi 0, %s76
      %s91 = sphi 0, %s77
      %s95 = sphi 0, %s95
      %s97 = sphi 0, %s95
      %s98 = sphi 0, %s97
      %s112 = sphi 0, %s98
      %s116 = sphi 0, %s116
      %s118 = sphi 0, %s116
      %s119 = sphi 0, %s118
      %s133 = sphi 0, %s119
      %s137 = sphi 0, %s137
      %s139 = sphi 0, %s137
      %s140 = sphi 0, %s139
      %s154 = sphi 0, %s140
      %s158 = sphi 0, %s158
      %s160 = sphi 0, %s158
      %s161 = sphi 0, %s160
      %s175 = sphi 0, %s161
      %s179 = sphi 0, %s179
      %s181 = sphi 0, %s179
      %s182 = sphi 0, %s181
      %s196 = sphi 0, %s182
      %s200 = sphi 0, %s200
      %s202 = sphi 0, %s200
      %s203 = sphi 0, %s202
      %s217 = sphi 0, %s203
      %s221 = sphi 0, %s221
      %s223 = sphi 0, %s221
      %s224 = sphi 0, %s223
      %s238 = sphi 0, %s224
      %s244 = sphi 0, %s246
      %s247 = sphi 0, %s244
      %s248 = sphi 0, %s247
      %s264 = sphi 0, %s248
    $region4: #{tpu_custom_call.1} parent=1 // loop_header_branch
      %22 = sbr.rel (%p20) target = $region8
    $region5: #{tpu_custom_call.1} parent=1 // loop_body
      %s24 = ssub.s32 %s19, 1
      %s25 = ssub.s32 %s19, 2
      %s26 = sadd.s32 %s19, 1
      %s27 = ssub.s32 %s19, %s26
      %p28 = scmp.eq.s32.totalorder %s27, 0
      %s30 = sadd.s32 %s29, 1
      %s31 = scalar_select %p28, %s29, %s30
      %p34 = pneg %p28
      %p35 = scmp.eq.s32.totalorder %s19, 1
      %p36 = por %p34, %p35
      %p37 = scmp.ne.s32.totalorder %s29, %s32
      %p38 = scmp.eq.s32.totalorder %s19, 0
      %p39 = por %p37, %p38
      %p40 = scmp.ne.s32.totalorder %s29, %s32
      %p41 = scmp.eq.s32.totalorder %s24, 1
      %p42 = por %p40, %p41
      %p43 = scmp.ne.s32.totalorder %s32, %s33
      %p44 = scmp.eq.s32.totalorder %s24, 0
      %p45 = por %p43, %p44
      %p46 = scmp.ne.s32.totalorder %s32, %s33
      %p47 = scmp.eq.s32.totalorder %s25, 1
      %p48 = por %p46, %p47
      %p50 = scmp.ne.s32.totalorder %s33, %s49
      %p51 = scmp.eq.s32.totalorder %s25, 0
      %p52 = por %p50, %p51
      %s54 = sadd.s32 %s53, 1
      %p57 = scmp.eq.s32.totalorder %s19, 1
      %p58 = scmp.ne.s32.totalorder %s53, %s55
      %p59 = scmp.eq.s32.totalorder %s19, 0
      %p60 = por %p58, %p59
      %p61 = scmp.ne.s32.totalorder %s53, %s55
      %p62 = scmp.eq.s32.totalorder %s24, 1
      %p63 = por %p61, %p62
      %p64 = scmp.ne.s32.totalorder %s55, %s56
      %p65 = scmp.eq.s32.totalorder %s24, 0
      %p66 = por %p64, %p65
      %p67 = scmp.ne.s32.totalorder %s55, %s56
      %p68 = scmp.eq.s32.totalorder %s25, 1
      %p69 = por %p67, %p68
      %p71 = scmp.ne.s32.totalorder %s56, %s70
      %p72 = scmp.eq.s32.totalorder %s25, 0
      %p73 = por %p71, %p72
      %s75 = sadd.s32 %s74, 1
      %p78 = scmp.eq.s32.totalorder %s19, 1
      %p79 = scmp.ne.s32.totalorder %s74, %s76
      %p80 = scmp.eq.s32.totalorder %s19, 0
      %p81 = por %p79, %p80
      %p82 = scmp.ne.s32.totalorder %s74, %s76
      %p83 = scmp.eq.s32.totalorder %s24, 1
      %p84 = por %p82, %p83
      %p85 = scmp.ne.s32.totalorder %s76, %s77
      %p86 = scmp.eq.s32.totalorder %s24, 0
      %p87 = por %p85, %p86
      %p88 = scmp.ne.s32.totalorder %s76, %s77
      %p89 = scmp.eq.s32.totalorder %s25, 1
      %p90 = por %p88, %p89
      %p92 = scmp.ne.s32.totalorder %s77, %s91
      %p93 = scmp.eq.s32.totalorder %s25, 0
      %p94 = por %p92, %p93
      %s96 = sadd.s32 %s95, 1
      %p99 = scmp.eq.s32.totalorder %s19, 1
      %p100 = scmp.ne.s32.totalorder %s95, %s97
      %p101 = scmp.eq.s32.totalorder %s19, 0
      %p102 = por %p100, %p101
      %p103 = scmp.ne.s32.totalorder %s95, %s97
      %p104 = scmp.eq.s32.totalorder %s24, 1
      %p105 = por %p103, %p104
      %p106 = scmp.ne.s32.totalorder %s97, %s98
      %p107 = scmp.eq.s32.totalorder %s24, 0
      %p108 = por %p106, %p107
      %p109 = scmp.ne.s32.totalorder %s97, %s98
      %p110 = scmp.eq.s32.totalorder %s25, 1
      %p111 = por %p109, %p110
      %p113 = scmp.ne.s32.totalorder %s98, %s112
      %p114 = scmp.eq.s32.totalorder %s25, 0
      %p115 = por %p113, %p114
      %s117 = sadd.s32 %s116, 1
      %p120 = scmp.eq.s32.totalorder %s19, 1
      %p121 = scmp.ne.s32.totalorder %s116, %s118
      %p122 = scmp.eq.s32.totalorder %s19, 0
      %p123 = por %p121, %p122
      %p124 = scmp.ne.s32.totalorder %s116, %s118
      %p125 = scmp.eq.s32.totalorder %s24, 1
      %p126 = por %p124, %p125
      %p127 = scmp.ne.s32.totalorder %s118, %s119
      %p128 = scmp.eq.s32.totalorder %s24, 0
      %p129 = por %p127, %p128
      %p130 = scmp.ne.s32.totalorder %s118, %s119
      %p131 = scmp.eq.s32.totalorder %s25, 1
      %p132 = por %p130, %p131
      %p134 = scmp.ne.s32.totalorder %s119, %s133
      %p135 = scmp.eq.s32.totalorder %s25, 0
      %p136 = por %p134, %p135
      %s138 = sadd.s32 %s137, 1
      %p141 = scmp.eq.s32.totalorder %s19, 1
      %p142 = scmp.ne.s32.totalorder %s137, %s139
      %p143 = scmp.eq.s32.totalorder %s19, 0
      %p144 = por %p142, %p143
      %p145 = scmp.ne.s32.totalorder %s137, %s139
      %p146 = scmp.eq.s32.totalorder %s24, 1
      %p147 = por %p145, %p146
      %p148 = scmp.ne.s32.totalorder %s139, %s140
      %p149 = scmp.eq.s32.totalorder %s24, 0
      %p150 = por %p148, %p149
      %p151 = scmp.ne.s32.totalorder %s139, %s140
      %p152 = scmp.eq.s32.totalorder %s25, 1
      %p153 = por %p151, %p152
      %p155 = scmp.ne.s32.totalorder %s140, %s154
      %p156 = scmp.eq.s32.totalorder %s25, 0
      %p157 = por %p155, %p156
      %s159 = sadd.s32 %s158, 1
      %p162 = scmp.eq.s32.totalorder %s19, 1
      %p163 = scmp.ne.s32.totalorder %s158, %s160
      %p164 = scmp.eq.s32.totalorder %s19, 0
      %p165 = por %p163, %p164
      %p166 = scmp.ne.s32.totalorder %s158, %s160
      %p167 = scmp.eq.s32.totalorder %s24, 1
      %p168 = por %p166, %p167
      %p169 = scmp.ne.s32.totalorder %s160, %s161
      %p170 = scmp.eq.s32.totalorder %s24, 0
      %p171 = por %p169, %p170
      %p172 = scmp.ne.s32.totalorder %s160, %s161
      %p173 = scmp.eq.s32.totalorder %s25, 1
      %p174 = por %p172, %p173
      %p176 = scmp.ne.s32.totalorder %s161, %s175
      %p177 = scmp.eq.s32.totalorder %s25, 0
      %p178 = por %p176, %p177
      %s180 = sadd.s32 %s179, 1
      %p183 = scmp.eq.s32.totalorder %s19, 1
      %p184 = scmp.ne.s32.totalorder %s179, %s181
      %p185 = scmp.eq.s32.totalorder %s19, 0
      %p186 = por %p184, %p185
      %p187 = scmp.ne.s32.totalorder %s179, %s181
      %p188 = scmp.eq.s32.totalorder %s24, 1
      %p189 = por %p187, %p188
      %p190 = scmp.ne.s32.totalorder %s181, %s182
      %p191 = scmp.eq.s32.totalorder %s24, 0
      %p192 = por %p190, %p191
      %p193 = scmp.ne.s32.totalorder %s181, %s182
      %p194 = scmp.eq.s32.totalorder %s25, 1
      %p195 = por %p193, %p194
      %p197 = scmp.ne.s32.totalorder %s182, %s196
      %p198 = scmp.eq.s32.totalorder %s25, 0
      %p199 = por %p197, %p198
      %s201 = sadd.s32 %s200, 1
      %p204 = scmp.eq.s32.totalorder %s19, 1
      %p205 = scmp.ne.s32.totalorder %s200, %s202
      %p206 = scmp.eq.s32.totalorder %s19, 0
      %p207 = por %p205, %p206
      %p208 = scmp.ne.s32.totalorder %s200, %s202
      %p209 = scmp.eq.s32.totalorder %s24, 1
      %p210 = por %p208, %p209
      %p211 = scmp.ne.s32.totalorder %s202, %s203
      %p212 = scmp.eq.s32.totalorder %s24, 0
      %p213 = por %p211, %p212
      %p214 = scmp.ne.s32.totalorder %s202, %s203
      %p215 = scmp.eq.s32.totalorder %s25, 1
      %p216 = por %p214, %p215
      %p218 = scmp.ne.s32.totalorder %s203, %s217
      %p219 = scmp.eq.s32.totalorder %s25, 0
      %p220 = por %p218, %p219
      %s222 = sadd.s32 %s221, 1
      %p225 = scmp.eq.s32.totalorder %s19, 1
      %p226 = scmp.ne.s32.totalorder %s221, %s223
      %p227 = scmp.eq.s32.totalorder %s19, 0
      %p228 = por %p226, %p227
      %p229 = scmp.ne.s32.totalorder %s221, %s223
      %p230 = scmp.eq.s32.totalorder %s24, 1
      %p231 = por %p229, %p230
      %p232 = scmp.ne.s32.totalorder %s223, %s224
      %p233 = scmp.eq.s32.totalorder %s24, 0
      %p234 = por %p232, %p233
      %p235 = scmp.ne.s32.totalorder %s223, %s224
      %p236 = scmp.eq.s32.totalorder %s25, 1
      %p237 = por %p235, %p236
      %p239 = scmp.ne.s32.totalorder %s224, %s238
      %p240 = scmp.eq.s32.totalorder %s25, 0
      %p241 = por %p239, %p240
      %s242 = ssub.s32 %s19, %s26
      %p243 = scmp.eq.s32.totalorder %s242, 0
      %s245 = sadd.s32 %s244, 1
      %s246 = scalar_select %p243, %s244, %s245
      %p249 = pneg %p243
      %p250 = scmp.eq.s32.totalorder %s19, 1
      %p251 = por %p249, %p250
      %p252 = scmp.ne.s32.totalorder %s244, %s247
      %p253 = scmp.eq.s32.totalorder %s19, 0
      %p254 = por %p252, %p253
      %p255 = scmp.ne.s32.totalorder %s244, %s247
      %p256 = scmp.eq.s32.totalorder %s24, 1
      %p257 = por %p255, %p256
      %p258 = scmp.ne.s32.totalorder %s247, %s248
      %p259 = scmp.eq.s32.totalorder %s24, 0
      %p260 = por %p258, %p259
      %p261 = scmp.ne.s32.totalorder %s247, %s248
      %p262 = scmp.eq.s32.totalorder %s25, 1
      %p263 = por %p261, %p262
      %p265 = scmp.ne.s32.totalorder %s248, %s264
      %p266 = scmp.eq.s32.totalorder %s25, 0
      %p267 = por %p265, %p266
      %p268 = scmp.le.s32.totalorder 1, %s19
      %p269 = scmp.lt.s32.totalorder %s19, 3
      %p270 = pnand %p268, %p269
      %p271 = pneg %p270
      // Predicated region
      $region9: #{tpu_custom_call.1} parent=5 // pred_check
        _
      $region10: #{tpu_custom_call.1} parent=5 // pred_check_branch
        %273 = sbr.rel (%p270) target = $region12
      $region11: #{tpu_custom_call.1} parent=5 // pred_region
        %s274 = ssub.s32 %s19, 1
        // Predicated region
        $region13: #{tpu_custom_call.1} parent=11 // pred_check
          %p275 = pneg %p66
        $region14: #{tpu_custom_call.1} parent=11 // pred_check_branch
          %277 = sbr.rel (%p275) target = $region16
        $region15: #{tpu_custom_call.1} parent=11 // pred_region
          _
        $region16: #{tpu_custom_call.1} parent=11 // pred_fallthru
          _
        // Predicated region
        $region17: #{tpu_custom_call.1} parent=11 // pred_check
          %p278 = pneg %p87
        $region18: #{tpu_custom_call.1} parent=11 // pred_check_branch
          %280 = sbr.rel (%p278) target = $region20
        $region19: #{tpu_custom_call.1} parent=11 // pred_region
          _
        $region20: #{tpu_custom_call.1} parent=11 // pred_fallthru
          _
        // Predicated region
        $region21: #{tpu_custom_call.1} parent=11 // pred_check
          %p281 = pneg %p108
        $region22: #{tpu_custom_call.1} parent=11 // pred_check_branch
          %283 = sbr.rel (%p281) target = $region24
        $region23: #{tpu_custom_call.1} parent=11 // pred_region
          _
        $region24: #{tpu_custom_call.1} parent=11 // pred_fallthru
          _
        // Predicated region
        $region25: #{tpu_custom_call.1} parent=11 // pred_check
          %p284 = pneg %p129
        $region26: #{tpu_custom_call.1} parent=11 // pred_check_branch
          %286 = sbr.rel (%p284) target = $region28
        $region27: #{tpu_custom_call.1} parent=11 // pred_region
          _
        $region28: #{tpu_custom_call.1} parent=11 // pred_fallthru
          _
        // Predicated region
        $region29: #{tpu_custom_call.1} parent=11 // pred_check
          %p287 = pneg %p150
        $region30: #{tpu_custom_call.1} parent=11 // pred_check_branch
          %289 = sbr.rel (%p287) target = $region32
        $region31: #{tpu_custom_call.1} parent=11 // pred_region
          _
        $region32: #{tpu_custom_call.1} parent=11 // pred_fallthru
          _
        // Predicated region
        $region33: #{tpu_custom_call.1} parent=11 // pred_check
          %p290 = pneg %p171
        $region34: #{tpu_custom_call.1} parent=11 // pred_check_branch
          %292 = sbr.rel (%p290) target = $region36
        $region35: #{tpu_custom_call.1} parent=11 // pred_region
          _
        $region36: #{tpu_custom_call.1} parent=11 // pred_fallthru
          _
        // Predicated region
        $region37: #{tpu_custom_call.1} parent=11 // pred_check
          %p293 = pneg %p192
        $region38: #{tpu_custom_call.1} parent=11 // pred_check_branch
          %295 = sbr.rel (%p293) target = $region40
        $region39: #{tpu_custom_call.1} parent=11 // pred_region
          _
        $region40: #{tpu_custom_call.1} parent=11 // pred_fallthru
          _
        // Predicated region
        $region41: #{tpu_custom_call.1} parent=11 // pred_check
          %p296 = pneg %p213
        $region42: #{tpu_custom_call.1} parent=11 // pred_check_branch
          %298 = sbr.rel (%p296) target = $region44
        $region43: #{tpu_custom_call.1} parent=11 // pred_region
          _
        $region44: #{tpu_custom_call.1} parent=11 // pred_fallthru
          _
        // Predicated region
        $region45: #{tpu_custom_call.1} parent=11 // pred_check
          %p299 = pneg %p234
        $region46: #{tpu_custom_call.1} parent=11 // pred_check_branch
          %301 = sbr.rel (%p299) target = $region48
        $region47: #{tpu_custom_call.1} parent=11 // pred_region
          _
        $region48: #{tpu_custom_call.1} parent=11 // pred_fallthru
          _
      $region12: #{tpu_custom_call.1} parent=5 // pred_fallthru
        _
      %p302 = scmp.lt.s32.totalorder %s19, 2
      // Predicated region
      $region49: #{tpu_custom_call.1} parent=5 // pred_check
        %p303 = pneg %p302
      $region50: #{tpu_custom_call.1} parent=5 // pred_check_branch
        %305 = sbr.rel (%p303) target = $region52
      $region51: #{tpu_custom_call.1} parent=5 // pred_region
        // Predicated region
        $region53: #{tpu_custom_call.1} parent=51 // pred_check
          %p306 = pneg %p39
        $region54: #{tpu_custom_call.1} parent=51 // pred_check_branch
          %308 = sbr.rel (%p306) target = $region56
        $region55: #{tpu_custom_call.1} parent=51 // pred_region
          %p309 = scmp.lt.s32.totalorder %s19, 1
          %s310 = scalar_select %p309, %s19, 1
          %s311 = smul.addr %s310, 2
          %s312 = smul.addr %s311, 8
          %s313 = scalar_lea.vmem %s0, %s312
        $region56: #{tpu_custom_call.1} parent=51 // pred_fallthru
          _
      $region52: #{tpu_custom_call.1} parent=5 // pred_fallthru
        _
      %p314 = scmp.le.s32.totalorder 1, %s19
      %p315 = scmp.lt.s32.totalorder %s19, 3
      %p316 = pnand %p314, %p315
      %p317 = pneg %p316
      // Predicated region
      $region57: #{tpu_custom_call.1} parent=5 // pred_check
        _
      $region58: #{tpu_custom_call.1} parent=5 // pred_check_branch
        %319 = sbr.rel (%p316) target = $region60
      $region59: #{tpu_custom_call.1} parent=5 // pred_region
        %s320 = ssub.s32 %s19, 1
        %p321 = scmp.lt.s32.totalorder %s24, 1
        %s322 = scalar_select %p321, %s24, 1
        %s323 = smul.addr %s322, 2
        %s324 = smul.addr %s323, 8
        %s325 = scalar_lea.vmem %s0, %s324
        %p326 = pneg %p45
        %p327 = pneg %p42
        %p328 = pneg %p66
        %p329 = pneg %p63
        %p330 = pneg %p87
        %p331 = pneg %p84
        %p332 = pneg %p108
        %p333 = pneg %p105
        %p334 = pneg %p129
        %p335 = pneg %p126
        %p336 = pneg %p150
        %p337 = pneg %p147
        %p338 = pneg %p171
        %p339 = pneg %p168
        %p340 = pneg %p192
        %p341 = pneg %p189
        %p342 = pneg %p213
        %p343 = pneg %p210
        %p344 = pneg %p234
        %p345 = pneg %p231
        %p346 = pneg %p260
        %p347 = pneg %p257
        %s348 = sand.u32 %s247, 1
        %s349 = scalar_lea.sflag [#allocation3], %s348
        %s350 = sand.u32 %s247, 1
        %s351 = smul.addr %s350, 16
        %s352 = scalar_lea.vmem [#allocation2], %s351
        %p353 = scmp.lt.s32.totalorder %s24, 1
        %s354 = scalar_select %p353, %s24, 1
        %s355 = smul.addr %s354, 2
        %s356 = smul.addr %s355, 8
        %s357 = scalar_lea.vmem %s0, %s356
        %v359 = vld [vmem:[%s357] sm:$0xff]
        %v360 = vld [vmem:[%s357 + $0x8] sm:$0xff]
        %v361 = vld [vmem:[%s2] sm:$0xf]
        %v362 = vld [vmem:[%s2 + $0x4] sm:$0xf]
        %v363 = vpack.c.bf16 %v359, %v359
        %v364 = vpack.c.bf16 %v360, %v360
        %v365 = vld [vmem:[%s3] sm:$0xff]
        %v366 = vld [vmem:[%s3 + $0x8] sm:$0xff]
        %368 = vset.pattern.permute.xlu0 0
        %369 = vperm.xlu0 %368, %v365
        %v370 = vpop.permute.xlu0 %369
        %373 = vset.pattern.permute.xlu0 0
        %374 = vperm.xlu0 %373, %v366
        %v375 = vpop.permute.xlu0 %374
        %v379 = vunpack.c.l.b16 %v361
        %v380 = vunpack.c.l.b16 %v362
        %v381 = vpack.c.b16 %v380, %v379
        %vm382 = vcmask 64512
        %v384 = vsel %vm382, %v381, 0
        %vm386 = vcmask 1043456
        %v388 = vsel %vm386, %v363, 0
        %v391 = vsel %vm386, %v364, 0
        %393 = vmatprep.subr.bf16.mxu0 %v391
        %394 = vmatpush1.bf16.msra.mxu0 %v388
        %395 = vmatprep.subr.bf16.mxu0 0
        %396 = vmatpush1.bf16.msra.mxu0 0
        %397 = vmatprep.subr.bf16.mxu0 0
        %398 = vmatpush1.bf16.msra.mxu0 0
        %399 = vmatprep.subr.bf16.mxu0 0
        %400 = vmatpush1.bf16.msra.mxu0 0
        %401 = vmatprep.subr.bf16.mxu0 0
        %402 = vmatpush1.bf16.msra.mxu0 0
        %403 = vmatprep.subr.bf16.mxu0 0
        %404 = vmatpush1.bf16.msra.mxu0 0
        %405 = vmatprep.subr.bf16.mxu0 0
        %406 = vmatpush1.bf16.msra.mxu0 0
        %407 = vmatprep.subr.bf16.mxu0 0
        %408 = vmatpush1.bf16.msra.mxu0 0
        %409 = vmatprep.subr.bf16.mxu0 0
        %410 = vmatpush1.bf16.msra.mxu0 0
        %411 = vmatprep.subr.bf16.mxu0 0
        %412 = vmatpush1.bf16.msra.mxu0 0
        %413 = vmatprep.subr.bf16.mxu0 0
        %414 = vmatpush1.bf16.msra.mxu0 0
        %415 = vmatprep.subr.bf16.mxu0 0
        %416 = vmatpush1.bf16.msra.mxu0 0
        %417 = vmatprep.subr.bf16.mxu0 0
        %418 = vmatpush1.bf16.msra.mxu0 0
        %419 = vmatprep.subr.bf16.mxu0 0
        %420 = vmatpush1.bf16.msra.mxu0 0
        %421 = vmatprep.subr.bf16.mxu0 0
        %422 = vmatpush1.bf16.msra.mxu0 0
        %423 = vmatprep.subr.bf16.mxu0 0
        %424 = vmatpush1.bf16.msra.mxu0 0
        %425 = vmatprep.mubr.bf16.mxu0 0
        %426 = vmatmul.mubr.bf16.gmra.mrb[0].mxu0 %v384
        %v427 = vpop.f32.mrb[0].mxu0
        %v428 = vadd.f32 %v370, %v427
        %v429 = vpop.f32.mrb[0].mxu0
        %v430 = vadd.f32 %v370, %v429
        %v431 = vpop.f32.mrb[0].mxu0
        %v432 = vadd.f32 %v375, %v431
        %v433 = vpop.f32.mrb[0].mxu0
        %v434 = vadd.f32 %v375, %v433
        %435 = vdwg.mxu0
        %vm436 = vcmp.ge.f32.partialorder %v428, 0.0
        %vm437 = vcmp.ge.f32.partialorder %v430, 0.0
        %vm438 = vcmp.ge.f32.partialorder %v432, 0.0
        %vm439 = vcmp.ge.f32.partialorder %v434, 0.0
        %v440 = vmul.f32 %v428, 0.01
        %v441 = vmul.f32 %v430, 0.01
        %v442 = vmul.f32 %v432, 0.01
        %v443 = vmul.f32 %v434, 0.01
        %v444 = vsel %vm436, %v428, %v440
        %v445 = vsel %vm437, %v430, %v441
        %v446 = vsel %vm438, %v432, %v442
        %v447 = vsel %vm439, %v434, %v443
        %v448 = vld [vmem:[%s1] ss:$4 sm:$0x3]
        %s449 = scalar_lea.vmem %s1, 1
        %v450 = vld [vmem:[%s449] ss:$4 sm:$0x3]
        %451 = vrot.lane.b32.xlu0 %v446, 1
        %v452 = vpop.permute.xlu0 %451
        %453 = vrot.lane.b32.xlu0 %v447, 1
        %v454 = vpop.permute.xlu0 %453
        %v455 = vlaneseq
        %v456 = vand.u32 %v455, 127
        %vm457 = vcmp.lt.s32.totalorder %v456, 1
        %v458 = vsel %vm457, %v452, %v454
        %v459 = vsel %vm457, %v454, %v452
        %v461 = vlaneseq
        %v462 = vshrl.u32 %v461, 7
        %v463 = vsub.s32 0, %v462
        %v464 = vrot.slane %v448, %v463
        %v465 = vlaneseq
        %v466 = vshrl.u32 %v465, 7
        %v467 = vsub.s32 1, %v466
        %v468 = vrot.slane %v448, %v467
        %v471 = vmul.f32 %v459, %v464
        %v472 = vmul.f32 %v458, %v468
        %473 = vrot.lane.b32.xlu0 %v446, 127
        %v474 = vpop.permute.xlu0 %473
        %475 = vrot.lane.b32.xlu0 %v447, 127
        %v476 = vpop.permute.xlu0 %475
        %vm477 = vcmp.lt.s32.totalorder %v456, 127
        %v478 = vsel %vm477, %v474, %v476
        %v479 = vsel %vm477, %v476, %v474
        %v481 = vlaneseq
        %v482 = vshrl.u32 %v481, 7
        %v483 = vsub.s32 0, %v482
        %v484 = vrot.slane %v450, %v483
        %v485 = vlaneseq
        %v486 = vshrl.u32 %v485, 7
        %v487 = vsub.s32 1, %v486
        %v488 = vrot.slane %v450, %v487
        %v491 = vmul.f32 %v478, %v484
        %v492 = vmul.f32 %v479, %v488
        %v493 = vld [vmem:[%s4] sm:$0xf]
        %v494 = vpack.c.bf16 %v446, %v471
        %v495 = vpack.c.bf16 %v447, %v472
        %v496 = vpack.c.bf16 %v491, %v491
        %v497 = vpack.c.bf16 %v492, %v492
        %v498 = vld [vmem:[%s5] sm:$0xff]
        %500 = vset.pattern.permute.xlu0 0
        %501 = vperm.xlu0 %500, %v498
        %v502 = vpop.permute.xlu0 %501
        %vm504 = vcmask 195584
        %v506 = vsel %vm504, %v493, 0
        %v509 = vsel %vm386, %v496, 0
        %v512 = vsel %vm386, %v497, 0
        %514 = vmatprep.subr.bf16.mxu0 %v495
        %515 = vmatpush1.bf16.msra.mxu0 %v494
        %516 = vmatprep.subr.bf16.mxu0 %v512
        %517 = vmatpush1.bf16.msra.mxu0 %v509
        %518 = vmatprep.subr.bf16.mxu0 0
        %519 = vmatpush1.bf16.msra.mxu0 0
        %520 = vmatprep.subr.bf16.mxu0 0
        %521 = vmatpush1.bf16.msra.mxu0 0
        %522 = vmatprep.subr.bf16.mxu0 0
        %523 = vmatpush1.bf16.msra.mxu0 0
        %524 = vmatprep.subr.bf16.mxu0 0
        %525 = vmatpush1.bf16.msra.mxu0 0
        %526 = vmatprep.subr.bf16.mxu0 0
        %527 = vmatpush1.bf16.msra.mxu0 0
        %528 = vmatprep.subr.bf16.mxu0 0
        %529 = vmatpush1.bf16.msra.mxu0 0
        %530 = vmatprep.subr.bf16.mxu0 0
        %531 = vmatpush1.bf16.msra.mxu0 0
        %532 = vmatprep.subr.bf16.mxu0 0
        %533 = vmatpush1.bf16.msra.mxu0 0
        %534 = vmatprep.subr.bf16.mxu0 0
        %535 = vmatpush1.bf16.msra.mxu0 0
        %536 = vmatprep.subr.bf16.mxu0 0
        %537 = vmatpush1.bf16.msra.mxu0 0
        %538 = vmatprep.subr.bf16.mxu0 0
        %539 = vmatpush1.bf16.msra.mxu0 0
        %540 = vmatprep.subr.bf16.mxu0 0
        %541 = vmatpush1.bf16.msra.mxu0 0
        %542 = vmatprep.subr.bf16.mxu0 0
        %543 = vmatpush1.bf16.msra.mxu0 0
        %544 = vmatprep.subr.bf16.mxu0 0
        %545 = vmatpush1.bf16.msra.mxu0 0
        %546 = vmatprep.mubr.bf16.mxu0 0
        %547 = vmatmul.mubr.bf16.gmra.mrb[0].mxu0 %v506
        %v548 = vpop.f32.mrb[0].mxu0
        %v549 = vadd.f32 %v502, %v548
        %v550 = vpop.f32.mrb[0].mxu0
        %v551 = vadd.f32 %v502, %v550
        %v552 = vpop.f32.mrb[0].mxu0
        %v553 = vpop.f32.mrb[0].mxu0
        %554 = vdwg.mxu0
        %vm555 = vcmp.ge.f32.partialorder %v549, 0.0
        %vm556 = vcmp.ge.f32.partialorder %v551, 0.0
        %v557 = vmul.f32 %v549, 0.01
        %v558 = vmul.f32 %v551, 0.01
        %v559 = vsel %vm555, %v549, %v557
        %v560 = vsel %vm556, %v551, %v558
        %s561 = scalar_lea.vmem %s1, 2
        %v562 = vld [vmem:[%s561] ss:$4 sm:$0x3]
        %s563 = scalar_lea.vmem %s1, 3
        %v564 = vld [vmem:[%s563] ss:$4 sm:$0x3]
        %565 = vrot.lane.b32.xlu0 %v559, 16
        %v566 = vpop.permute.xlu0 %565
        %567 = vrot.lane.b32.xlu0 %v560, 16
        %v568 = vpop.permute.xlu0 %567
        %vm569 = vcmp.lt.s32.totalorder %v456, 16
        %v570 = vsel %vm569, %v566, %v568
        %v571 = vsel %vm569, %v568, %v566
        %v573 = vlaneseq
        %v574 = vshrl.u32 %v573, 7
        %v575 = vsub.s32 0, %v574
        %v576 = vrot.slane %v562, %v575
        %v577 = vlaneseq
        %v578 = vshrl.u32 %v577, 7
        %v579 = vsub.s32 1, %v578
        %v580 = vrot.slane %v562, %v579
        %v583 = vmul.f32 %v571, %v576
        %v584 = vmul.f32 %v570, %v580
        %585 = vrot.lane.b32.xlu0 %v559, 112
        %v586 = vpop.permute.xlu0 %585
        %587 = vrot.lane.b32.xlu0 %v560, 112
        %v588 = vpop.permute.xlu0 %587
        %vm589 = vcmp.lt.s32.totalorder %v456, 112
        %v590 = vsel %vm589, %v586, %v588
        %v591 = vsel %vm589, %v588, %v586
        %v593 = vlaneseq
        %v594 = vshrl.u32 %v593, 7
        %v595 = vsub.s32 0, %v594
        %v596 = vrot.slane %v564, %v595
        %v597 = vlaneseq
        %v598 = vshrl.u32 %v597, 7
        %v599 = vsub.s32 1, %v598
        %v600 = vrot.slane %v564, %v599
        %v603 = vmul.f32 %v590, %v596
        %v604 = vmul.f32 %v591, %v600
        %v605 = vld [vmem:[%s6] sm:$0xf]
        %v606 = vpack.c.bf16 %v559, %v583
        %v607 = vpack.c.bf16 %v560, %v584
        %v608 = vpack.c.bf16 %v603, %v603
        %v609 = vpack.c.bf16 %v604, %v604
        %v610 = vld [vmem:[%s7] sm:$0xff]
        %612 = vset.pattern.permute.xlu0 0
        %613 = vperm.xlu0 %612, %v610
        %v614 = vpop.permute.xlu0 %613
        %v617 = vsel %vm504, %v605, 0
        %v620 = vsel %vm386, %v608, 0
        %v623 = vsel %vm386, %v609, 0
        %625 = vmatprep.subr.bf16.mxu0 %v607
        %626 = vmatpush1.bf16.msra.mxu0 %v606
        %627 = vmatprep.subr.bf16.mxu0 %v623
        %628 = vmatpush1.bf16.msra.mxu0 %v620
        %629 = vmatprep.subr.bf16.mxu0 0
        %630 = vmatpush1.bf16.msra.mxu0 0
        %631 = vmatprep.subr.bf16.mxu0 0
        %632 = vmatpush1.bf16.msra.mxu0 0
        %633 = vmatprep.subr.bf16.mxu0 0
        %634 = vmatpush1.bf16.msra.mxu0 0
        %635 = vmatprep.subr.bf16.mxu0 0
        %636 = vmatpush1.bf16.msra.mxu0 0
        %637 = vmatprep.subr.bf16.mxu0 0
        %638 = vmatpush1.bf16.msra.mxu0 0
        %639 = vmatprep.subr.bf16.mxu0 0
        %640 = vmatpush1.bf16.msra.mxu0 0
        %641 = vmatprep.subr.bf16.mxu0 0
        %642 = vmatpush1.bf16.msra.mxu0 0
        %643 = vmatprep.subr.bf16.mxu0 0
        %644 = vmatpush1.bf16.msra.mxu0 0
        %645 = vmatprep.subr.bf16.mxu0 0
        %646 = vmatpush1.bf16.msra.mxu0 0
        %647 = vmatprep.subr.bf16.mxu0 0
        %648 = vmatpush1.bf16.msra.mxu0 0
        %649 = vmatprep.subr.bf16.mxu0 0
        %650 = vmatpush1.bf16.msra.mxu0 0
        %651 = vmatprep.subr.bf16.mxu0 0
        %652 = vmatpush1.bf16.msra.mxu0 0
        %653 = vmatprep.subr.bf16.mxu0 0
        %654 = vmatpush1.bf16.msra.mxu0 0
        %655 = vmatprep.subr.bf16.mxu0 0
        %656 = vmatpush1.bf16.msra.mxu0 0
        %657 = vmatprep.mubr.bf16.mxu0 0
        %658 = vmatmul.mubr.bf16.gmra.mrb[0].mxu0 %v617
        %v659 = vpop.f32.mrb[0].mxu0
        %v660 = vadd.f32 %v614, %v659
        %v661 = vpop.f32.mrb[0].mxu0
        %v662 = vadd.f32 %v614, %v661
        %v663 = vpop.f32.mrb[0].mxu0
        %v664 = vpop.f32.mrb[0].mxu0
        %665 = vdwg.mxu0
        %vm666 = vcmp.ge.f32.partialorder %v660, 0.0
        %vm667 = vcmp.ge.f32.partialorder %v662, 0.0
        %v668 = vmul.f32 %v660, 0.01
        %v669 = vmul.f32 %v662, 0.01
        %v670 = vsel %vm666, %v660, %v668
        %v671 = vsel %vm667, %v662, %v669
        %v672 = vld [vmem:[%s8] sm:$0xf]
        %v673 = vpack.c.bf16 %v670, %v444
        %v674 = vpack.c.bf16 %v671, %v445
        %v675 = vld [vmem:[%s9] sm:$0xff]
        %677 = vset.pattern.permute.xlu0 0
        %678 = vperm.xlu0 %677, %v675
        %v679 = vpop.permute.xlu0 %678
        %vm681 = vcmask 130048
        %v683 = vsel %vm681, %v672, 0
        %685 = vmatprep.subr.bf16.mxu0 %v674
        %686 = vmatpush1.bf16.msra.mxu0 %v673
        %687 = vmatprep.subr.bf16.mxu0 0
        %688 = vmatpush1.bf16.msra.mxu0 0
        %689 = vmatprep.subr.bf16.mxu0 0
        %690 = vmatpush1.bf16.msra.mxu0 0
        %691 = vmatprep.subr.bf16.mxu0 0
        %692 = vmatpush1.bf16.msra.mxu0 0
        %693 = vmatprep.subr.bf16.mxu0 0
        %694 = vmatpush1.bf16.msra.mxu0 0
        %695 = vmatprep.subr.bf16.mxu0 0
        %696 = vmatpush1.bf16.msra.mxu0 0
        %697 = vmatprep.subr.bf16.mxu0 0
        %698 = vmatpush1.bf16.msra.mxu0 0
        %699 = vmatprep.subr.bf16.mxu0 0
        %700 = vmatpush1.bf16.msra.mxu0 0
        %701 = vmatprep.subr.bf16.mxu0 0
        %702 = vmatpush1.bf16.msra.mxu0 0
        %703 = vmatprep.subr.bf16.mxu0 0
        %704 = vmatpush1.bf16.msra.mxu0 0
        %705 = vmatprep.subr.bf16.mxu0 0
        %706 = vmatpush1.bf16.msra.mxu0 0
        %707 = vmatprep.subr.bf16.mxu0 0
        %708 = vmatpush1.bf16.msra.mxu0 0
        %709 = vmatprep.subr.bf16.mxu0 0
        %710 = vmatpush1.bf16.msra.mxu0 0
        %711 = vmatprep.subr.bf16.mxu0 0
        %712 = vmatpush1.bf16.msra.mxu0 0
        %713 = vmatprep.subr.bf16.mxu0 0
        %714 = vmatpush1.bf16.msra.mxu0 0
        %715 = vmatprep.subr.bf16.mxu0 0
        %716 = vmatpush1.bf16.msra.mxu0 0
        %717 = vmatprep.mubr.bf16.mxu0 0
        %718 = vmatmul.mubr.bf16.gmra.mrb[0].mxu0 %v683
        %v719 = vpop.f32.mrb[0].mxu0
        %v720 = vadd.f32 %v679, %v719
        %v721 = vpop.f32.mrb[0].mxu0
        %v722 = vadd.f32 %v679, %v721
        %v723 = vpop.f32.mrb[0].mxu0
        %v724 = vpop.f32.mrb[0].mxu0
        %725 = vdwg.mxu0
        %v726 = vmul.f32 %v720, 0.2
        %v727 = vmul.f32 %v722, 0.2
        %v728 = vadd.f32 %v726, %v359
        %v729 = vadd.f32 %v727, %v360
        %vm730 = vcmp.ge.f32.partialorder %v728, 0.0
        %vm731 = vcmp.ge.f32.partialorder %v729, 0.0
        %v732 = vmul.f32 %v728, 0.01
        %v733 = vmul.f32 %v729, 0.01
        %v734 = vsel %vm730, %v728, %v732
        %v735 = vsel %vm731, %v729, %v733
        %736 = vst [vmem:[%s352] sm:$0xff] %v734
        %737 = vst [vmem:[%s352 + $0x8] sm:$0xff] %v735
        %s738 = sand.u32 %s247, 1
        %s739 = scalar_lea.sflag [#allocation3], %s738
        %s740 = sand.u32 %s247, 1
        %s741 = smul.addr %s740, 16
        %s742 = scalar_lea.vmem [#allocation2], %s741
        // Predicated region
        $region61: #{tpu_custom_call.1} parent=59 // pred_check
          %p743 = pneg %p257
        $region62: #{tpu_custom_call.1} parent=59 // pred_check_branch
          %745 = sbr.rel (%p743) target = $region64
        $region63: #{tpu_custom_call.1} parent=59 // pred_region
          %s747 = ssub.s32 256, 256
          %748 = vsyncadd %s739, %s747
          %s749 = smul.addr %s24, 2
          %s750 = smul.addr %s749, 128
          %s751 = scalar_lea.hbm %s10, %s750
          %s753 = sshll.u32 %s742, 4
          %s754 = int_to_ptr.vmem [resolvable:$true] %s753
          %756 = dma.vmem_to_hbm [thread:$0]  %s754, 256, %s751, %s739
        $region64: #{tpu_custom_call.1} parent=59 // pred_fallthru
          _
      $region60: #{tpu_custom_call.1} parent=5 // pred_fallthru
        _
      %p757 = scmp.le.s32.totalorder 2, %s19
      // Predicated region
      $region65: #{tpu_custom_call.1} parent=5 // pred_check
        %p758 = pneg %p757
      $region66: #{tpu_custom_call.1} parent=5 // pred_check_branch
        %760 = sbr.rel (%p758) target = $region68
      $region67: #{tpu_custom_call.1} parent=5 // pred_region
        %s761 = ssub.s32 %s19, 2
        // Predicated region
        $region69: #{tpu_custom_call.1} parent=67 // pred_check
          %p762 = pneg %p263
        $region70: #{tpu_custom_call.1} parent=67 // pred_check_branch
          %764 = sbr.rel (%p762) target = $region72
        $region71: #{tpu_custom_call.1} parent=67 // pred_region
          %s765 = sand.u32 %s248, 1
          %s766 = scalar_lea.sflag [#allocation3], %s765
          %s767 = sand.u32 %s248, 1
          %s768 = smul.addr %s767, 16
          %s769 = scalar_lea.vmem [#allocation2], %s768
          %770 = dma.done %s766, 256
        $region72: #{tpu_custom_call.1} parent=67 // pred_fallthru
          _
      $region68: #{tpu_custom_call.1} parent=5 // pred_fallthru
        _
    $region6: #{tpu_custom_call.1} parent=1 // loop_footer
      %s23 = sadd.s32 1, %s19
    $region7: #{tpu_custom_call.1} parent=1 // loop_footer_branch
      %18 = sbr.rel target = $region3
    $region8: #{tpu_custom_call.1} parent=1 // loop_exit
      _
    %771 = vsyncpa [#allocation3], 1
    %s772 = scalar_lea.sflag [#allocation3], 1
    %773 = vsyncpa %s772, 1

</llo_original>
